<compile_context>
chip_gen: v6e
topology: v6e:2x2x1
jax: 0.10.0
libtpu: 0.0.40
codegen_flags: <defaults>
</compile_context>

<pallas_src>
import jax
import jax.numpy as jnp
from jax.experimental import pallas as pl
from jax.experimental.pallas import tpu as pltpu

PAD = 128                  # lane-dense padding for every feature dim
N_LAYERS = 3
SLAB_ROWS = N_LAYERS * PAD  # 384 rows: [W1_aug | W2_aug | W3_aug], each (128, 128)


def q_mlp_kernel(x_ref, w_ref, o_ref):
    """One batch tile: (TB, 128) activations @ (384, 128) packed weight slab.

    x_ref lane `state_dim` is 1.0 (bias lane); each augmented weight block
    contains its bias row and (for layers 1-2) a 1.0 that re-creates the bias
    lane for the next layer, so biases are fully folded into the matmuls.
    """
    x = x_ref[...]
    w1 = w_ref[0 * PAD:1 * PAD, :]
    w2 = w_ref[1 * PAD:2 * PAD, :]
    w3 = w_ref[2 * PAD:3 * PAD, :]
    h = jnp.maximum(jnp.dot(x, w1, preferred_element_type=jnp.float32), 0.0)
    h = jnp.maximum(jnp.dot(h, w2, preferred_element_type=jnp.float32), 0.0)
    o_ref[...] = jnp.dot(h, w3, preferred_element_type=jnp.float32).astype(o_ref.dtype)


def pack_params(w1, b1, w2, b2, w3, b3):
    """Pack all layer params into one (384, 128) f32 slab (bias-folded)."""
    state_dim, hidden = w1.shape
    action_dim = w3.shape[1]
    assert state_dim + 1 <= PAD and hidden + 1 <= PAD and action_dim <= PAD

    # Layer 1: rows 0..state_dim-1 = W1, row state_dim = [b1 | 1.0 at col `hidden`]
    w1a = jnp.zeros((PAD, PAD), jnp.float32)
    w1a = w1a.at[:state_dim, :hidden].set(w1.astype(jnp.float32))
    w1a = w1a.at[state_dim, :hidden].set(b1.astype(jnp.float32))
    w1a = w1a.at[state_dim, hidden].set(1.0)   # propagate the ones lane to h1[:, hidden]

    # Layer 2: rows 0..hidden-1 = W2, row `hidden` = [b2 | 1.0 at col `hidden`]
    w2a = jnp.zeros((PAD, PAD), jnp.float32)
    w2a = w2a.at[:hidden, :hidden].set(w2.astype(jnp.float32))
    w2a = w2a.at[hidden, :hidden].set(b2.astype(jnp.float32))
    w2a = w2a.at[hidden, hidden].set(1.0)      # propagate the ones lane to h2[:, hidden]

    # Layer 3: rows 0..hidden-1 = W3, row `hidden` = b3 (no further propagation)
    w3a = jnp.zeros((PAD, PAD), jnp.float32)
    w3a = w3a.at[:hidden, :action_dim].set(w3.astype(jnp.float32))
    w3a = w3a.at[hidden, :action_dim].set(b3.astype(jnp.float32))

    return jnp.concatenate([w1a, w2a, w3a], axis=0)   # (384, 128)


def q_forward(x, slab, action_dim):
    """Forward pass. x: (B, state_dim) f32, slab: (384, 128) packed params."""
    B, state_dim = x.shape
    # Batch tile: multiple of 8 sublanes, capped at 128 rows per grid step.
    TB = 128 if B >= 128 else max(8, -(-B // 8) * 8)
    B_pad = -(-B // TB) * TB

    # Lane-dense, zero-padded activations with a 1.0 bias lane at `state_dim`.
    x_pad = jnp.zeros((B_pad, PAD), jnp.float32)
    x_pad = x_pad.at[:B, :state_dim].set(x.astype(jnp.float32))
    x_pad = x_pad.at[:, state_dim].set(1.0)

    out = pl.pallas_call(
        q_mlp_kernel,
        out_shape=jax.ShapeDtypeStruct((B_pad, PAD), jnp.float32),
        grid_spec=pltpu.PrefetchScalarGridSpec(
            num_scalar_prefetch=0,
            grid=(B_pad // TB,),
            in_specs=[
                pl.BlockSpec((TB, PAD), lambda i: (i, 0)),          # activation stream
                pl.BlockSpec((SLAB_ROWS, PAD), lambda i: (0, 0)),   # weights VMEM-resident
            ],
            out_specs=pl.BlockSpec((TB, PAD), lambda i: (i, 0)),
        ),
        compiler_params=pltpu.CompilerParams(
            dimension_semantics=("parallel",)),
    )(x_pad, slab)
    return out[:B, :action_dim]


def xavier_normal(key, fan_in, fan_out, gain=1.0):
    # torch.nn.init.xavier_normal_: std = gain * sqrt(2 / (fan_in + fan_out))
    std = gain * (2.0 / (fan_in + fan_out)) ** 0.5
    return std * jax.random.normal(key, (fan_in, fan_out), dtype=jnp.float32)


def init_q_params(key, state_dim, action_dim, hidden_dim=50):
    k1, k2, k3, kb1, kb2, kb3 = jax.random.split(key, 6)
    # Weights: xavier-normal (as in Q._init_weights), stored as (in, out) so
    # the kernel computes y = x @ W + b (== torch's x @ W.T + b).
    w1 = xavier_normal(k1, state_dim, hidden_dim)
    w2 = xavier_normal(k2, hidden_dim, hidden_dim)
    w3 = xavier_normal(k3, hidden_dim, action_dim)

    # Biases: PyTorch nn.Linear default init: U(-1/sqrt(fan_in), 1/sqrt(fan_in)).
    def bias(k, fan_in, out):
        bound = 1.0 / (fan_in ** 0.5)
        return jax.random.uniform(k, (out,), jnp.float32, minval=-bound, maxval=bound)

    b1 = bias(kb1, state_dim, hidden_dim)
    b2 = bias(kb2, hidden_dim, hidden_dim)
    b3 = bias(kb3, hidden_dim, action_dim)
    return (w1, b1, w2, b2, w3, b3)


if __name__ == "__main__":
    # CartPole-like dims: state_dim=4, action_dim=2, hidden_dim=50, batch=8.
    state_dim, action_dim, hidden_dim, batch = 4, 2, 50, 8

    key = jax.random.PRNGKey(0)
    kx, kp = jax.random.split(key)
    x = jax.random.normal(kx, (batch, state_dim), dtype=jnp.float32)
    params = init_q_params(kp, state_dim, action_dim, hidden_dim)
    slab = pack_params(*params)   # one-time packing into a single (384,128) slab

    out = q_forward(x, slab, action_dim)
    jax.block_until_ready(out)

    # Pure-JAX reference check (same math as the kernel / the torch module).
    w1, b1, w2, b2, w3, b3 = params
    ref = jnp.maximum(x @ w1 + b1, 0.0)
    ref = jnp.maximum(ref @ w2 + b2, 0.0)
    ref = ref @ w3 + b3
    assert out.shape == (batch, action_dim)
    assert jnp.allclose(out, ref, atol=1e-5, rtol=1e-5)

    print("KERNEL_OK")
</pallas_src>

<mosaic_0001>
module attributes {stable_mosaic.version = 11 : i64} {
  func.func @q_mlp_kernel(%arg0: i32, %arg1: memref<8x128xf32, #tpu.memory_space<vmem>>, %arg2: memref<384x128xf32, #tpu.memory_space<vmem>>, %arg3: memref<8x128xf32, #tpu.memory_space<vmem>>) attributes {dimension_semantics = [#tpu.dimension_semantics<parallel>], iteration_bounds = array<i64: 1>, scalar_prefetch = 0 : i64, scratch_operands = 0 : i64, tpu.core_type = #tpu.core_type<tc>, window_params = [{transform_indices = @transform_0, window_bounds = array<i64: 8, 128>}, {pipeline_mode = #tpu.pipeline_mode<synchronous>, transform_indices = @transform_1, window_bounds = array<i64: 384, 128>}, {transform_indices = @transform_2, window_bounds = array<i64: 8, 128>}]} {
    %c0 = arith.constant 0 : index
    %c0_0 = arith.constant 0 : index
    %0 = vector.load %arg1[%c0, %c0_0] : memref<8x128xf32, #tpu.memory_space<vmem>>, vector<8x128xf32>
    %c0_1 = arith.constant 0 : index
    %c0_2 = arith.constant 0 : index
    %1 = vector.load %arg2[%c0_1, %c0_2] : memref<384x128xf32, #tpu.memory_space<vmem>>, vector<128x128xf32>
    %c128 = arith.constant 128 : index
    %c0_3 = arith.constant 0 : index
    %2 = vector.load %arg2[%c128, %c0_3] : memref<384x128xf32, #tpu.memory_space<vmem>>, vector<128x128xf32>
    %c256 = arith.constant 256 : index
    %c0_4 = arith.constant 0 : index
    %3 = vector.load %arg2[%c256, %c0_4] : memref<384x128xf32, #tpu.memory_space<vmem>>, vector<128x128xf32>
    %cst = arith.constant dense<0.000000e+00> : vector<8x128xf32>
    %4 = tpu.matmul %0, %1, %cst {dimension_numbers = #tpu.dot_dimension_numbers<[1], [0], [0], [1], [0, 0, 1, 1], [], []>} : vector<8x128xf32>, vector<128x128xf32>, vector<8x128xf32> -> vector<8x128xf32>
    %cst_5 = arith.constant 0.000000e+00 : f32
    %5 = vector.broadcast %cst_5 : f32 to vector<8x128xf32>
    %6 = arith.maximumf %4, %5 : vector<8x128xf32>
    %cst_6 = arith.constant dense<0.000000e+00> : vector<8x128xf32>
    %7 = tpu.matmul %6, %2, %cst_6 {dimension_numbers = #tpu.dot_dimension_numbers<[1], [0], [0], [1], [0, 0, 1, 1], [], []>} : vector<8x128xf32>, vector<128x128xf32>, vector<8x128xf32> -> vector<8x128xf32>
    %cst_7 = arith.constant 0.000000e+00 : f32
    %8 = vector.broadcast %cst_7 : f32 to vector<8x128xf32>
    %9 = arith.maximumf %7, %8 : vector<8x128xf32>
    %cst_8 = arith.constant dense<0.000000e+00> : vector<8x128xf32>
    %10 = tpu.matmul %9, %3, %cst_8 {dimension_numbers = #tpu.dot_dimension_numbers<[1], [0], [0], [1], [0, 0, 1, 1], [], []>} : vector<8x128xf32>, vector<128x128xf32>, vector<8x128xf32> -> vector<8x128xf32>
    %c0_9 = arith.constant 0 : index
    %c0_10 = arith.constant 0 : index
    %11 = vector.load %arg3[%c0_9, %c0_10] : memref<8x128xf32, #tpu.memory_space<vmem>>, vector<8x128xf32>
    tpu.vector_store %arg3[%c0_9, %c0_10], %10 {strides = array<i32>} : memref<8x128xf32, #tpu.memory_space<vmem>>, vector<8x128xf32>,
    return
  }
  func.func @transform_0(%arg0: i32) -> (i32, i32) {
    %c0_i32 = arith.constant 0 : i32
    %c0_i32_0 = arith.constant 0 : i32
    return %arg0, %c0_i32 : i32, i32
  }
  func.func @transform_1(%arg0: i32) -> (i32, i32) {
    %c0_i32 = arith.constant 0 : i32
    %c0_i32_0 = arith.constant 0 : i32
    %c0_i32_1 = arith.constant 0 : i32
    return %c0_i32, %c0_i32_0 : i32, i32
  }
  func.func @transform_2(%arg0: i32) -> (i32, i32) {
    %c0_i32 = arith.constant 0 : i32
    %c0_i32_0 = arith.constant 0 : i32
    return %arg0, %c0_i32 : i32, i32
  }
}

</mosaic_0001>

<llo_original>
// kernel: tpu_custom_call.1
$region0: #{tpu_custom_call.1}
  #allocation0 [shape = 'u32[]', space=smem, size = 0x4, offset = 0x4, fixed_abs, tag = 'smem constant byte address 0x4 - core index']
  #allocation1 [shape = 'u32[144,128]{1,0:T(1,128)}', space=vmem, size = 0x12000, scoped, tag = 'internal scratch']
  %s0 = inlined_call_operand.hbm [shape: f32[8,128], index: 0, kind: input, shape index: {}]
  %s1 = inlined_call_operand.hbm [shape: f32[384,128], index: 1, kind: input, shape index: {}]
  %s2 = inlined_call_operand.hbm [shape: f32[8,128], index: 2, kind: output, shape index: {}]
  %s3 = sld [smem:[#allocation0]]
  $region26: #{tpu_custom_call.1} parent=0
    _
  %s5 = ssub.s32 1, %s3
  %s6 = scalar_select 0, %s5, %s3
  $region1: #{tpu_custom_call.1} parent=0
    #allocation2 [shape = 'u8[4096]{0}', space=vmem, size = 0x1000, scoped, tag = 'input window, operand 0, single buffered']
    #allocation3 [shape = 's32[1]{0}', space=sflag, size = 0x4, scoped, tag = 'scoped memory for tpu_custom_call.1']
    #allocation4 [shape = 's32[1]{0}', space=sflag, size = 0x4, scoped, tag = 'scoped memory for tpu_custom_call.1']
    #allocation5 [shape = 'u8[196608]{0}', space=vmem, size = 0x30000, scoped, tag = 'input window, operand 1, single buffered']
    #allocation6 [shape = 's32[1]{0}', space=sflag, size = 0x4, scoped, tag = 'scoped memory for tpu_custom_call.1']
    #allocation7 [shape = 'u8[4096]{0}', space=vmem, size = 0x1000, scoped, tag = 'output window, operand 0, single buffered']
    %7 = vsyncpa [#allocation3], 0
    %8 = vsyncpa [#allocation6], 0
    %9 = vsyncpa [#allocation4], 0
    // Predicated region
    $region2: #{tpu_custom_call.1} parent=1 // pred_check
      _
    $region3: #{tpu_custom_call.1} parent=1 // pred_check_branch
      %11 = sbr.rel (0) target = $region5
    $region4: #{tpu_custom_call.1} parent=1 // pred_region
      %s13 = ssub.s32 128, 128
      %14 = vsyncadd [#allocation3], %s13
      %s16 = sshll.u32 [#allocation2], 4
      %s17 = int_to_ptr.vmem [resolvable:$true] %s16
      %19 = dma.hbm_to_vmem [thread:$0]  %s0, 128, %s17, [#allocation3]
    $region5: #{tpu_custom_call.1} parent=1 // pred_fallthru
      _
    // Predicated region
    $region6: #{tpu_custom_call.1} parent=1 // pred_check
      _
    $region7: #{tpu_custom_call.1} parent=1 // pred_check_branch
      %21 = sbr.rel (0) target = $region9
    $region8: #{tpu_custom_call.1} parent=1 // pred_region
      %s23 = ssub.s32 6144, 6144
      %24 = vsyncadd [#allocation6], %s23
      %s25 = sshll.u32 [#allocation5], 4
      %s26 = int_to_ptr.vmem [resolvable:$true] %s25
      %31 = dma.hbm_to_vmem [thread:$0]  %s1, 6144, %s26, [#allocation6], 128, 128, 8
    $region9: #{tpu_custom_call.1} parent=1 // pred_fallthru
      _
    // Predicated region
    $region10: #{tpu_custom_call.1} parent=1 // pred_check
      _
    $region11: #{tpu_custom_call.1} parent=1 // pred_check_branch
      %33 = sbr.rel (0) target = $region13
    $region12: #{tpu_custom_call.1} parent=1 // pred_region
      %34 = dma.done [#allocation3], 128
    $region13: #{tpu_custom_call.1} parent=1 // pred_fallthru
      _
    // Predicated region
    $region14: #{tpu_custom_call.1} parent=1 // pred_check
      _
    $region15: #{tpu_custom_call.1} parent=1 // pred_check_branch
      %36 = sbr.rel (0) target = $region17
    $region16: #{tpu_custom_call.1} parent=1 // pred_region
      %37 = dma.done [#allocation6], 6144
    $region17: #{tpu_custom_call.1} parent=1 // pred_fallthru
      _
    %v38 = vld [vmem:[#allocation2] sm:$0xff]
    %v39 = vld [vmem:[#allocation5] sm:$0xff]
    %v40 = vld [vmem:[#allocation5 + $0x8] sm:$0xff]
    %v41 = vld [vmem:[#allocation5 + $0x10] sm:$0xff]
    %v42 = vld [vmem:[#allocation5 + $0x18] sm:$0xff]
    %v43 = vld [vmem:[#allocation5 + $0x20] sm:$0xff]
    %v44 = vld [vmem:[#allocation5 + $0x28] sm:$0xff]
    %v45 = vld [vmem:[#allocation5 + $0x30] sm:$0xff]
    %v46 = vld [vmem:[#allocation5 + $0x38] sm:$0xff]
    %v47 = vld [vmem:[#allocation5 + $0x40] sm:$0xff]
    %v48 = vld [vmem:[#allocation5 + $0x48] sm:$0xff]
    %v49 = vld [vmem:[#allocation5 + $0x50] sm:$0xff]
    %v50 = vld [vmem:[#allocation5 + $0x58] sm:$0xff]
    %v51 = vld [vmem:[#allocation5 + $0x60] sm:$0xff]
    %v52 = vld [vmem:[#allocation5 + $0x68] sm:$0xff]
    %v53 = vld [vmem:[#allocation5 + $0x70] sm:$0xff]
    %v54 = vld [vmem:[#allocation5 + $0x78] sm:$0xff]
    %v55 = vld [vmem:[#allocation5 + $0x80] sm:$0xff]
    %v56 = vld [vmem:[#allocation5 + $0x88] sm:$0xff]
    %v57 = vld [vmem:[#allocation5 + $0x90] sm:$0xff]
    %v58 = vld [vmem:[#allocation5 + $0x98] sm:$0xff]
    %v59 = vld [vmem:[#allocation5 + $0xa0] sm:$0xff]
    %v60 = vld [vmem:[#allocation5 + $0xa8] sm:$0xff]
    %v61 = vld [vmem:[#allocation5 + $0xb0] sm:$0xff]
    %v62 = vld [vmem:[#allocation5 + $0xb8] sm:$0xff]
    %v63 = vld [vmem:[#allocation5 + $0xc0] sm:$0xff]
    %v64 = vld [vmem:[#allocation5 + $0xc8] sm:$0xff]
    %v65 = vld [vmem:[#allocation5 + $0xd0] sm:$0xff]
    %v66 = vld [vmem:[#allocation5 + $0xd8] sm:$0xff]
    %v67 = vld [vmem:[#allocation5 + $0xe0] sm:$0xff]
    %v68 = vld [vmem:[#allocation5 + $0xe8] sm:$0xff]
    %v69 = vld [vmem:[#allocation5 + $0xf0] sm:$0xff]
    %v70 = vld [vmem:[#allocation5 + $0xf8] sm:$0xff]
    %v71 = vld [vmem:[#allocation5 + $0x100] sm:$0xff]
    %v72 = vld [vmem:[#allocation5 + $0x108] sm:$0xff]
    %v73 = vld [vmem:[#allocation5 + $0x110] sm:$0xff]
    %v74 = vld [vmem:[#allocation5 + $0x118] sm:$0xff]
    %v75 = vld [vmem:[#allocation5 + $0x120] sm:$0xff]
    %v76 = vld [vmem:[#allocation5 + $0x128] sm:$0xff]
    %v77 = vld [vmem:[#allocation5 + $0x130] sm:$0xff]
    %v78 = vld [vmem:[#allocation5 + $0x138] sm:$0xff]
    %v79 = vld [vmem:[#allocation5 + $0x140] sm:$0xff]
    %v80 = vld [vmem:[#allocation5 + $0x148] sm:$0xff]
    %v81 = vld [vmem:[#allocation5 + $0x150] sm:$0xff]
    %v82 = vld [vmem:[#allocation5 + $0x158] sm:$0xff]
    %v83 = vld [vmem:[#allocation5 + $0x160] sm:$0xff]
    %v84 = vld [vmem:[#allocation5 + $0x168] sm:$0xff]
    %v85 = vld [vmem:[#allocation5 + $0x170] sm:$0xff]
    %v86 = vld [vmem:[#allocation5 + $0x178] sm:$0xff]
    %87 = vmatprep.subr.mxu0 0.0
    %88 = vmatpush1.msra.mxu0 %v54
    %89 = vmatprep.subr.mxu0 0.0
    %90 = vmatpush1.msra.mxu0 %v53
    %91 = vmatprep.subr.mxu0 0.0
    %92 = vmatpush1.msra.mxu0 %v52
    %93 = vmatprep.subr.mxu0 0.0
    %94 = vmatpush1.msra.mxu0 %v51
    %95 = vmatprep.subr.mxu0 0.0
    %96 = vmatpush1.msra.mxu0 %v50
    %97 = vmatprep.subr.mxu0 0.0
    %98 = vmatpush1.msra.mxu0 %v49
    %99 = vmatprep.subr.mxu0 0.0
    %100 = vmatpush1.msra.mxu0 %v48
    %101 = vmatprep.subr.mxu0 0.0
    %102 = vmatpush1.msra.mxu0 %v47
    %103 = vmatprep.subr.mxu0 0.0
    %104 = vmatpush1.msra.mxu0 %v46
    %105 = vmatprep.subr.mxu0 0.0
    %106 = vmatpush1.msra.mxu0 %v45
    %107 = vmatprep.subr.mxu0 0.0
    %108 = vmatpush1.msra.mxu0 %v44
    %109 = vmatprep.subr.mxu0 0.0
    %110 = vmatpush1.msra.mxu0 %v43
    %111 = vmatprep.subr.mxu0 0.0
    %112 = vmatpush1.msra.mxu0 %v42
    %113 = vmatprep.subr.mxu0 0.0
    %114 = vmatpush1.msra.mxu0 %v41
    %115 = vmatprep.subr.mxu0 0.0
    %116 = vmatpush1.msra.mxu0 %v40
    %117 = vmatprep.subr.mxu0 0.0
    %118 = vmatpush1.msra.mxu0 %v39
    %119 = vmatprep.subr.mxu0 0.0
    %120 = vmatpush2.msra.mxu0 0.0
    %121 = vmatprep.subr.mxu0 0.0
    %122 = vmatpush2.msra.mxu0 0.0
    %123 = vmatprep.subr.mxu0 0.0
    %124 = vmatpush2.msra.mxu0 0.0
    %125 = vmatprep.subr.mxu0 0.0
    %126 = vmatpush2.msra.mxu0 0.0
    %127 = vmatprep.subr.mxu0 0.0
    %128 = vmatpush2.msra.mxu0 0.0
    %129 = vmatprep.subr.mxu0 0.0
    %130 = vmatpush2.msra.mxu0 0.0
    %131 = vmatprep.subr.mxu0 0.0
    %132 = vmatpush2.msra.mxu0 0.0
    %133 = vmatprep.subr.mxu0 0.0
    %134 = vmatpush2.msra.mxu0 0.0
    %135 = vmatprep.subr.mxu0 0.0
    %136 = vmatpush2.msra.mxu0 0.0
    %137 = vmatprep.subr.mxu0 0.0
    %138 = vmatpush2.msra.mxu0 0.0
    %139 = vmatprep.subr.mxu0 0.0
    %140 = vmatpush2.msra.mxu0 0.0
    %141 = vmatprep.subr.mxu0 0.0
    %142 = vmatpush2.msra.mxu0 0.0
    %143 = vmatprep.subr.mxu0 0.0
    %144 = vmatpush2.msra.mxu0 0.0
    %145 = vmatprep.subr.mxu0 0.0
    %146 = vmatpush2.msra.mxu0 0.0
    %147 = vmatprep.subr.mxu0 0.0
    %148 = vmatpush2.msra.mxu0 0.0
    %149 = vmatprep.subr.mxu0 0.0
    %150 = vmatpush2.msra.mxu0 0.0
    %151 = vmatprep.mubr.f32.mxu0 0.0
    %152 = vmatmul.mubr.f32.gmra.mxu0 %v38
    %v153 = vpop.f32.mrf.mxu0
    %v154 = vadd.f32 0.0, %v153
    %v155 = vpop.f32.mrf.mxu0
    %156 = vdwg.mxu0
    %v157 = vmax.f32 %v154, 0.0
    %158 = vmatprep.subr.mxu0 0.0
    %159 = vmatpush1.msra.mxu0 %v70
    %160 = vmatprep.subr.mxu0 0.0
    %161 = vmatpush1.msra.mxu0 %v69
    %162 = vmatprep.subr.mxu0 0.0
    %163 = vmatpush1.msra.mxu0 %v68
    %164 = vmatprep.subr.mxu0 0.0
    %165 = vmatpush1.msra.mxu0 %v67
    %166 = vmatprep.subr.mxu0 0.0
    %167 = vmatpush1.msra.mxu0 %v66
    %168 = vmatprep.subr.mxu0 0.0
    %169 = vmatpush1.msra.mxu0 %v65
    %170 = vmatprep.subr.mxu0 0.0
    %171 = vmatpush1.msra.mxu0 %v64
    %172 = vmatprep.subr.mxu0 0.0
    %173 = vmatpush1.msra.mxu0 %v63
    %174 = vmatprep.subr.mxu0 0.0
    %175 = vmatpush1.msra.mxu0 %v62
    %176 = vmatprep.subr.mxu0 0.0
    %177 = vmatpush1.msra.mxu0 %v61
    %178 = vmatprep.subr.mxu0 0.0
    %179 = vmatpush1.msra.mxu0 %v60
    %180 = vmatprep.subr.mxu0 0.0
    %181 = vmatpush1.msra.mxu0 %v59
    %182 = vmatprep.subr.mxu0 0.0
    %183 = vmatpush1.msra.mxu0 %v58
    %184 = vmatprep.subr.mxu0 0.0
    %185 = vmatpush1.msra.mxu0 %v57
    %186 = vmatprep.subr.mxu0 0.0
    %187 = vmatpush1.msra.mxu0 %v56
    %188 = vmatprep.subr.mxu0 0.0
    %189 = vmatpush1.msra.mxu0 %v55
    %190 = vmatprep.subr.mxu0 0.0
    %191 = vmatpush2.msra.mxu0 0.0
    %192 = vmatprep.subr.mxu0 0.0
    %193 = vmatpush2.msra.mxu0 0.0
    %194 = vmatprep.subr.mxu0 0.0
    %195 = vmatpush2.msra.mxu0 0.0
    %196 = vmatprep.subr.mxu0 0.0
    %197 = vmatpush2.msra.mxu0 0.0
    %198 = vmatprep.subr.mxu0 0.0
    %199 = vmatpush2.msra.mxu0 0.0
    %200 = vmatprep.subr.mxu0 0.0
    %201 = vmatpush2.msra.mxu0 0.0
    %202 = vmatprep.subr.mxu0 0.0
    %203 = vmatpush2.msra.mxu0 0.0
    %204 = vmatprep.subr.mxu0 0.0
    %205 = vmatpush2.msra.mxu0 0.0
    %206 = vmatprep.subr.mxu0 0.0
    %207 = vmatpush2.msra.mxu0 0.0
    %208 = vmatprep.subr.mxu0 0.0
    %209 = vmatpush2.msra.mxu0 0.0
    %210 = vmatprep.subr.mxu0 0.0
    %211 = vmatpush2.msra.mxu0 0.0
    %212 = vmatprep.subr.mxu0 0.0
    %213 = vmatpush2.msra.mxu0 0.0
    %214 = vmatprep.subr.mxu0 0.0
    %215 = vmatpush2.msra.mxu0 0.0
    %216 = vmatprep.subr.mxu0 0.0
    %217 = vmatpush2.msra.mxu0 0.0
    %218 = vmatprep.subr.mxu0 0.0
    %219 = vmatpush2.msra.mxu0 0.0
    %220 = vmatprep.subr.mxu0 0.0
    %221 = vmatpush2.msra.mxu0 0.0
    %222 = vmatprep.mubr.f32.mxu0 0.0
    %223 = vmatmul.mubr.f32.gmra.mxu0 %v157
    %v224 = vpop.f32.mrf.mxu0
    %v225 = vadd.f32 0.0, %v224
    %v226 = vpop.f32.mrf.mxu0
    %227 = vdwg.mxu0
    %v228 = vmax.f32 %v225, 0.0
    %229 = vmatprep.subr.mxu0 0.0
    %230 = vmatpush1.msra.mxu0 %v86
    %231 = vmatprep.subr.mxu0 0.0
    %232 = vmatpush1.msra.mxu0 %v85
    %233 = vmatprep.subr.mxu0 0.0
    %234 = vmatpush1.msra.mxu0 %v84
    %235 = vmatprep.subr.mxu0 0.0
    %236 = vmatpush1.msra.mxu0 %v83
    %237 = vmatprep.subr.mxu0 0.0
    %238 = vmatpush1.msra.mxu0 %v82
    %239 = vmatprep.subr.mxu0 0.0
    %240 = vmatpush1.msra.mxu0 %v81
    %241 = vmatprep.subr.mxu0 0.0
    %242 = vmatpush1.msra.mxu0 %v80
    %243 = vmatprep.subr.mxu0 0.0
    %244 = vmatpush1.msra.mxu0 %v79
    %245 = vmatprep.subr.mxu0 0.0
    %246 = vmatpush1.msra.mxu0 %v78
    %247 = vmatprep.subr.mxu0 0.0
    %248 = vmatpush1.msra.mxu0 %v77
    %249 = vmatprep.subr.mxu0 0.0
    %250 = vmatpush1.msra.mxu0 %v76
    %251 = vmatprep.subr.mxu0 0.0
    %252 = vmatpush1.msra.mxu0 %v75
    %253 = vmatprep.subr.mxu0 0.0
    %254 = vmatpush1.msra.mxu0 %v74
    %255 = vmatprep.subr.mxu0 0.0
    %256 = vmatpush1.msra.mxu0 %v73
    %257 = vmatprep.subr.mxu0 0.0
    %258 = vmatpush1.msra.mxu0 %v72
    %259 = vmatprep.subr.mxu0 0.0
    %260 = vmatpush1.msra.mxu0 %v71
    %261 = vmatprep.subr.mxu0 0.0
    %262 = vmatpush2.msra.mxu0 0.0
    %263 = vmatprep.subr.mxu0 0.0
    %264 = vmatpush2.msra.mxu0 0.0
    %265 = vmatprep.subr.mxu0 0.0
    %266 = vmatpush2.msra.mxu0 0.0
    %267 = vmatprep.subr.mxu0 0.0
    %268 = vmatpush2.msra.mxu0 0.0
    %269 = vmatprep.subr.mxu0 0.0
    %270 = vmatpush2.msra.mxu0 0.0
    %271 = vmatprep.subr.mxu0 0.0
    %272 = vmatpush2.msra.mxu0 0.0
    %273 = vmatprep.subr.mxu0 0.0
    %274 = vmatpush2.msra.mxu0 0.0
    %275 = vmatprep.subr.mxu0 0.0
    %276 = vmatpush2.msra.mxu0 0.0
    %277 = vmatprep.subr.mxu0 0.0
    %278 = vmatpush2.msra.mxu0 0.0
    %279 = vmatprep.subr.mxu0 0.0
    %280 = vmatpush2.msra.mxu0 0.0
    %281 = vmatprep.subr.mxu0 0.0
    %282 = vmatpush2.msra.mxu0 0.0
    %283 = vmatprep.subr.mxu0 0.0
    %284 = vmatpush2.msra.mxu0 0.0
    %285 = vmatprep.subr.mxu0 0.0
    %286 = vmatpush2.msra.mxu0 0.0
    %287 = vmatprep.subr.mxu0 0.0
    %288 = vmatpush2.msra.mxu0 0.0
    %289 = vmatprep.subr.mxu0 0.0
    %290 = vmatpush2.msra.mxu0 0.0
    %291 = vmatprep.subr.mxu0 0.0
    %292 = vmatpush2.msra.mxu0 0.0
    %293 = vmatprep.mubr.f32.mxu0 0.0
    %294 = vmatmul.mubr.f32.gmra.mxu0 %v228
    %v295 = vpop.f32.mrf.mxu0
    %v296 = vadd.f32 0.0, %v295
    %v297 = vpop.f32.mrf.mxu0
    %298 = vdwg.mxu0
    %299 = vst [vmem:[#allocation7] sm:$0xff] %v296
    // Predicated region
    $region18: #{tpu_custom_call.1} parent=1 // pred_check
      _
    $region19: #{tpu_custom_call.1} parent=1 // pred_check_branch
      %301 = sbr.rel (0) target = $region21
    $region20: #{tpu_custom_call.1} parent=1 // pred_region
      %s303 = ssub.s32 128, 128
      %304 = vsyncadd [#allocation4], %s303
      %s306 = sshll.u32 [#allocation7], 4
      %s307 = int_to_ptr.vmem [resolvable:$true] %s306
      %309 = dma.vmem_to_hbm [thread:$0]  %s307, 128, %s2, [#allocation4]
    $region21: #{tpu_custom_call.1} parent=1 // pred_fallthru
      _
    // Predicated region
    $region22: #{tpu_custom_call.1} parent=1 // pred_check
      _
    $region23: #{tpu_custom_call.1} parent=1 // pred_check_branch
      %311 = sbr.rel (0) target = $region25
    $region24: #{tpu_custom_call.1} parent=1 // pred_region
      %312 = dma.done [#allocation4], 128
    $region25: #{tpu_custom_call.1} parent=1 // pred_fallthru
      _
    %313 = vsyncpa [#allocation3], 1
    %314 = vsyncpa [#allocation6], 1
    %315 = vsyncpa [#allocation4], 1

</llo_original>
